<compile_context>
chip_gen: v5e
topology: v5e:2x2
jax: 0.10.0
libtpu: 0.0.40
codegen_flags: <defaults>
</compile_context>

<pallas_src>
import functools

import jax
import jax.numpy as jnp
from jax.experimental import pallas as pl
from jax.experimental.pallas import tpu as pltpu

_LANE = 128
_SUBLANE = 8


def _round_up(n, m):
    return ((n + m - 1) // m) * m


# ----------------------------------------------------------------------------
# Kernels
# ----------------------------------------------------------------------------
def _mlp_kernel_shallow(x_ref, w1_ref, b1_ref, w3_ref, b3_ref, o_ref):
    """num_hidden == 1 path: linear1 -> ReLU -> linear3 (w2/b2 never DMA'd)."""
    h = jnp.dot(x_ref[...], w1_ref[...], preferred_element_type=jnp.float32)
    h = jnp.maximum(h + b1_ref[...], 0.0)
    out = jnp.dot(h.astype(w3_ref.dtype), w3_ref[...],
                  preferred_element_type=jnp.float32)
    o_ref[...] = (out + b3_ref[...]).astype(o_ref.dtype)


def _mlp_kernel_deep(x_ref, w1_ref, b1_ref, w2_ref, b2_ref, w3_ref, b3_ref,
                     o_ref, *, num_hidden):
    """num_hidden > 1 path; hidden loop statically unrolled (trace-time constant)."""
    h = jnp.dot(x_ref[...], w1_ref[...], preferred_element_type=jnp.float32)
    h = jnp.maximum(h + b1_ref[...], 0.0)
    # Hoist w2/b2 reads out of the unrolled loop (JAX does not CSE repeated
    # ref loads / broadcasts).
    w2 = w2_ref[...]
    b2 = b2_ref[...]
    for _ in range(num_hidden - 1):
        h = jnp.dot(h.astype(w2.dtype), w2, preferred_element_type=jnp.float32)
        h = jnp.maximum(h + b2, 0.0)
    out = jnp.dot(h.astype(w3_ref.dtype), w3_ref[...],
                  preferred_element_type=jnp.float32)
    o_ref[...] = (out + b3_ref[...]).astype(o_ref.dtype)


# ----------------------------------------------------------------------------
# Wrapper
# ----------------------------------------------------------------------------
def mlp_dynamics_forward(x, params, *, num_hidden=1, batch_tile=None,
                         compute_dtype=None, out_dtype=None):
    """x: [B, obs_dim + act_dim]. params: dict of transposed weights/biases.

    compute_dtype: optional matmul-input dtype (bf16 works on v5e/v6e/v7x);
    MXU accumulation stays float32, biases/ReLU stay float32.
    out_dtype: output dtype (defaults to x.dtype at call time).
    """
    w1t, b1 = params["w1t"], params["b1"]   # [in, H], [1, H]
    w2t, b2 = params["w2t"], params["b2"]   # [H, H],  [1, H]
    w3t, b3 = params["w3t"], params["b3"]   # [H, obs],[1, obs]

    B, in_dim = x.shape
    H = w1t.shape[1]
    obs_dim = w3t.shape[1]
    out_dtype = jnp.dtype(x.dtype if out_dtype is None else out_dtype)

    # --- output feature axis: pad to 128 only if already >= 64 (<=2x bytes).
    # Otherwise emit the natural (tile, obs_dim) block (full-array-dim exception
    # to the (8,128) rule) and avoid 8x HBM writeback amplification.
    if obs_dim >= 64 and obs_dim % _LANE != 0:
        obs_out = _round_up(obs_dim, _LANE)
        w3t = jnp.pad(w3t, ((0, 0), (0, obs_out - obs_dim)))
        b3 = jnp.pad(b3, ((0, 0), (0, obs_out - obs_dim)))
    else:
        obs_out = obs_dim

    # --- optional low-precision matmul inputs (f32 accumulation in-kernel).
    # A caller-supplied x already in compute_dtype is used as-is (no cast pass).
    if compute_dtype is not None:
        compute_dtype = jnp.dtype(compute_dtype)
        if x.dtype != compute_dtype:
            x = x.astype(compute_dtype)
        w1t = w1t.astype(compute_dtype)
        w2t = w2t.astype(compute_dtype)
        w3t = w3t.astype(compute_dtype)

    # --- batch tiling ---------------------------------------------------------
    if batch_tile is None:
        # Keep the live f32 activation (tile x H) to ~8 MiB so v7x (64 MiB VMEM)
        # does not go spill-bound for large H.
        act_cap_rows = max(256, (8 << 20) // max(4 * H, 1))
        if B < 256:
            batch_tile = _round_up(max(B, 1), _SUBLANE)          # single tile
        else:
            # >= 2 grid steps (feeds both v7x TCs); big tiles amortize per-step
            # overhead and push DMA toward the HBM roofline.
            batch_tile = min(_round_up(-(-B // 2), _SUBLANE), 2048,
                             _round_up(act_cap_rows, _SUBLANE))
    batch_tile = max(_SUBLANE, _round_up(int(batch_tile), _SUBLANE))
    grid = (pl.cdiv(B, batch_tile),)   # ragged last block handled by Pallas

    # --- per-generation VMEM budget ------------------------------------------
    in_isz = jnp.dtype(x.dtype).itemsize
    w_isz = jnp.dtype(w1t.dtype).itemsize
    out_isz = out_dtype.itemsize
    tile_io_bytes = batch_tile * in_dim * in_isz + batch_tile * obs_out * out_isz
    if num_hidden <= 1:
        param_bytes = (w1t.size + w3t.size) * w_isz + (b1.size + b3.size) * 4
    else:
        param_bytes = ((w1t.size + w2t.size + w3t.size) * w_isz
                       + (b1.size + b2.size + b3.size) * 4)
    act_bytes = 2 * batch_tile * max(H, obs_out) * 4          # live f32 activations
    want = 2 * (tile_io_bytes + param_bytes) + act_bytes + (4 << 20)
    try:
        vmem_cap = int(pltpu.get_tpu_info().vmem_capacity_bytes)
    except Exception:
        vmem_cap = 128 << 20
    vmem_ceiling = (48 << 20) if vmem_cap <= (64 << 20) else (100 << 20)
    vmem_bytes = int(min(max(want, 8 << 20), vmem_ceiling))

    # --- cost estimate for XLA scheduling around the custom call --------------
    flops = 2 * B * (in_dim * H + max(num_hidden - 1, 0) * H * H + H * obs_dim)
    bytes_accessed = B * in_dim * in_isz + B * obs_out * out_isz + param_bytes
    cost = pl.CostEstimate(flops=int(flops), transcendentals=0,
                           bytes_accessed=int(bytes_accessed))

    # --- specs ---------------------------------------------------------------
    full2d = lambda shape: pl.BlockSpec(shape, lambda i: (0, 0))
    x_spec = pl.BlockSpec((batch_tile, in_dim), lambda i: (i, 0))
    out_spec = pl.BlockSpec((batch_tile, obs_out), lambda i: (i, 0))

    if num_hidden <= 1:
        kernel = _mlp_kernel_shallow
        in_specs = [
            x_spec,
            full2d((in_dim, H)), full2d((1, H)),
            full2d((H, obs_out)), full2d((1, obs_out)),
        ]
        args = (x, w1t, b1, w3t, b3)
    else:
        kernel = functools.partial(_mlp_kernel_deep, num_hidden=num_hidden)
        in_specs = [
            x_spec,
            full2d((in_dim, H)), full2d((1, H)),
            full2d((H, H)), full2d((1, H)),
            full2d((H, obs_out)), full2d((1, obs_out)),
        ]
        args = (x, w1t, b1, w2t, b2, w3t, b3)

    out = pl.pallas_call(
        kernel,
        out_shape=jax.ShapeDtypeStruct((B, obs_out), out_dtype),
        grid_spec=pltpu.PrefetchScalarGridSpec(
            num_scalar_prefetch=0,
            grid=grid,
            in_specs=in_specs,
            out_specs=out_spec,
        ),
        compiler_params=pltpu.CompilerParams(
            dimension_semantics=("parallel",),
            vmem_limit_bytes=vmem_bytes),
        cost_estimate=cost,
    )(*args)

    # Only slice if the output feature axis was padded (obs_dim >= 64 case).
    return out if obs_out == obs_dim else out[:, :obs_dim]


# ----------------------------------------------------------------------------
# Parameter init / reference
# ----------------------------------------------------------------------------
def init_params(key, observation_dim, action_dim, hidden_size):
    """Deterministic synthetic parameters; shapes match torch.nn.Linear layers."""
    in_dim = observation_dim + action_dim
    ks = jax.random.split(key, 6)

    # torch.nn.Linear stores W as [out, in]; we keep the transposed [in, out] form.
    def uniform(k, shape, fan_in):
        bound = 1.0 / jnp.sqrt(fan_in)
        return jax.random.uniform(k, shape, jnp.float32, -bound, bound)

    return {
        "w1t": uniform(ks[0], (in_dim, hidden_size), in_dim),
        "b1":  uniform(ks[1], (1, hidden_size), in_dim),
        "w2t": uniform(ks[2], (hidden_size, hidden_size), hidden_size),
        "b2":  uniform(ks[3], (1, hidden_size), hidden_size),
        "w3t": uniform(ks[4], (hidden_size, observation_dim), hidden_size),
        "b3":  uniform(ks[5], (1, observation_dim), hidden_size),
    }


def reference_forward(x, params, num_hidden=1):
    h = jnp.maximum(x @ params["w1t"] + params["b1"], 0.0)
    for _ in range(num_hidden - 1):
        h = jnp.maximum(h @ params["w2t"] + params["b2"], 0.0)
    return h @ params["w3t"] + params["b3"]


# ----------------------------------------------------------------------------
# Demo / correctness checks
# ----------------------------------------------------------------------------
if __name__ == "__main__":
    observation_dim = 16
    action_dim = 8
    hidden_size = 32

    key = jax.random.PRNGKey(0)
    kx1, kx2, kp = jax.random.split(key, 3)
    params = init_params(kp, observation_dim, action_dim, hidden_size)

    # Case 1: module defaults (num_hidden=1) -> shallow kernel, w2/b2 never DMA'd,
    # natural (tile, 16) output block (no lane padding, no output slice).
    x1 = jax.random.normal(kx1, (8, observation_dim + action_dim), jnp.float32)
    out1 = jax.block_until_ready(mlp_dynamics_forward(x1, params, num_hidden=1))
    ref1 = reference_forward(x1, params, num_hidden=1)
    assert out1.shape == (8, observation_dim)
    assert out1.dtype == jnp.float32
    assert jnp.allclose(out1, ref1, atol=1e-5, rtol=1e-5)

    # Case 2: num_hidden=3, ragged batch 20 with tile 8 -> grid=(3,), last block
    # partial (handled in-pipeline; no wrapper pad / slice passes over x or out).
    x2 = jax.random.normal(kx2, (20, observation_dim + action_dim), jnp.float32)
    out2 = jax.block_until_ready(
        mlp_dynamics_forward(x2, params, num_hidden=3, batch_tile=8))
    ref2 = reference_forward(x2, params, num_hidden=3)
    assert out2.shape == (20, observation_dim)
    assert jnp.allclose(out2, ref2, atol=1e-5, rtol=1e-5)

    # Case 3: caller-supplied bf16 x (no wrapper cast pass), bf16 matmul inputs,
    # f32 MXU accumulation, f32 output.
    x3 = x1.astype(jnp.bfloat16)
    out3 = jax.block_until_ready(
        mlp_dynamics_forward(x3, params, num_hidden=1,
                             compute_dtype=jnp.bfloat16, out_dtype=jnp.float32))
    ref3 = reference_forward(x3.astype(jnp.float32), params, num_hidden=1)
    assert out3.shape == (8, observation_dim)
    assert jnp.allclose(out3, ref3, atol=5e-2, rtol=5e-2)

    print("KERNEL_OK")
</pallas_src>

<mosaic_0001>
module attributes {stable_mosaic.version = 11 : i64} {
  func.func @_mlp_kernel_shallow(%arg0: i32, %arg1: memref<8x24xf32, #tpu.memory_space<vmem>>, %arg2: memref<24x32xf32, #tpu.memory_space<vmem>>, %arg3: memref<1x32xf32, #tpu.memory_space<vmem>>, %arg4: memref<32x16xf32, #tpu.memory_space<vmem>>, %arg5: memref<1x16xf32, #tpu.memory_space<vmem>>, %arg6: memref<8x16xf32, #tpu.memory_space<vmem>>) attributes {dimension_semantics = [#tpu.dimension_semantics<parallel>], iteration_bounds = array<i64: 1>, scalar_prefetch = 0 : i64, scratch_operands = 0 : i64, tpu.core_type = #tpu.core_type<tc>, window_params = [{transform_indices = @transform_0, window_bounds = array<i64: 8, 24>}, {pipeline_mode = #tpu.pipeline_mode<synchronous>, transform_indices = @transform_1, window_bounds = array<i64: 24, 32>}, {pipeline_mode = #tpu.pipeline_mode<synchronous>, transform_indices = @transform_2, window_bounds = array<i64: 1, 32>}, {pipeline_mode = #tpu.pipeline_mode<synchronous>, transform_indices = @transform_3, window_bounds = array<i64: 32, 16>}, {pipeline_mode = #tpu.pipeline_mode<synchronous>, transform_indices = @transform_4, window_bounds = array<i64: 1, 16>}, {transform_indices = @transform_5, window_bounds = array<i64: 8, 16>}]} {
    %c0 = arith.constant 0 : index
    %c0_0 = arith.constant 0 : index
    %0 = vector.load %arg1[%c0, %c0_0] : memref<8x24xf32, #tpu.memory_space<vmem>>, vector<8x24xf32>
    %c0_1 = arith.constant 0 : index
    %c0_2 = arith.constant 0 : index
    %1 = vector.load %arg2[%c0_1, %c0_2] : memref<24x32xf32, #tpu.memory_space<vmem>>, vector<24x32xf32>
    %cst = arith.constant dense<0.000000e+00> : vector<8x32xf32>
    %2 = tpu.matmul %0, %1, %cst {dimension_numbers = #tpu.dot_dimension_numbers<[1], [0], [0], [1], [0, 0, 1, 1], [], []>} : vector<8x24xf32>, vector<24x32xf32>, vector<8x32xf32> -> vector<8x32xf32>
    %c0_3 = arith.constant 0 : index
    %c0_4 = arith.constant 0 : index
    %3 = vector.load %arg3[%c0_3, %c0_4] : memref<1x32xf32, #tpu.memory_space<vmem>>, vector<1x32xf32>
    %4 = vector.broadcast %3 : vector<1x32xf32> to vector<8x32xf32>
    %5 = arith.addf %2, %4 : vector<8x32xf32>
    %cst_5 = arith.constant 0.000000e+00 : f32
    %6 = vector.broadcast %cst_5 : f32 to vector<8x32xf32>
    %7 = arith.maximumf %5, %6 : vector<8x32xf32>
    %c0_6 = arith.constant 0 : index
    %c0_7 = arith.constant 0 : index
    %8 = vector.load %arg4[%c0_6, %c0_7] : memref<32x16xf32, #tpu.memory_space<vmem>>, vector<32x16xf32>
    %cst_8 = arith.constant dense<0.000000e+00> : vector<8x16xf32>
    %9 = tpu.matmul %7, %8, %cst_8 {dimension_numbers = #tpu.dot_dimension_numbers<[1], [0], [0], [1], [0, 0, 1, 1], [], []>} : vector<8x32xf32>, vector<32x16xf32>, vector<8x16xf32> -> vector<8x16xf32>
    %c0_9 = arith.constant 0 : index
    %c0_10 = arith.constant 0 : index
    %10 = vector.load %arg5[%c0_9, %c0_10] : memref<1x16xf32, #tpu.memory_space<vmem>>, vector<1x16xf32>
    %11 = vector.broadcast %10 : vector<1x16xf32> to vector<8x16xf32>
    %12 = arith.addf %9, %11 : vector<8x16xf32>
    %c0_11 = arith.constant 0 : index
    %c0_12 = arith.constant 0 : index
    %13 = vector.load %arg6[%c0_11, %c0_12] : memref<8x16xf32, #tpu.memory_space<vmem>>, vector<8x16xf32>
    tpu.vector_store %arg6[%c0_11, %c0_12], %12 {strides = array<i32>} : memref<8x16xf32, #tpu.memory_space<vmem>>, vector<8x16xf32>,
    return
  }
  func.func @transform_0(%arg0: i32) -> (i32, i32) {
    %c0_i32 = arith.constant 0 : i32
    %c0_i32_0 = arith.constant 0 : i32
    return %arg0, %c0_i32 : i32, i32
  }
  func.func @transform_1(%arg0: i32) -> (i32, i32) {
    %c0_i32 = arith.constant 0 : i32
    %c0_i32_0 = arith.constant 0 : i32
    %c0_i32_1 = arith.constant 0 : i32
    return %c0_i32, %c0_i32_0 : i32, i32
  }
  func.func @transform_2(%arg0: i32) -> (i32, i32) {
    %c0_i32 = arith.constant 0 : i32
    %c0_i32_0 = arith.constant 0 : i32
    %c0_i32_1 = arith.constant 0 : i32
    return %c0_i32, %c0_i32_0 : i32, i32
  }
  func.func @transform_3(%arg0: i32) -> (i32, i32) {
    %c0_i32 = arith.constant 0 : i32
    %c0_i32_0 = arith.constant 0 : i32
    %c0_i32_1 = arith.constant 0 : i32
    return %c0_i32, %c0_i32_0 : i32, i32
  }
  func.func @transform_4(%arg0: i32) -> (i32, i32) {
    %c0_i32 = arith.constant 0 : i32
    %c0_i32_0 = arith.constant 0 : i32
    %c0_i32_1 = arith.constant 0 : i32
    return %c0_i32, %c0_i32_0 : i32, i32
  }
  func.func @transform_5(%arg0: i32) -> (i32, i32) {
    %c0_i32 = arith.constant 0 : i32
    %c0_i32_0 = arith.constant 0 : i32
    return %arg0, %c0_i32 : i32, i32
  }
}

</mosaic_0001>

<llo_original>
// kernel: tpu_custom_call.1
$region0: #{tpu_custom_call.1}
  #allocation0 [shape = 'u32[]', space=smem, size = 0x4, offset = 0x4, fixed_abs, tag = 'smem constant byte address 0x4 - core index']
  #allocation1 [shape = 'u32[72,128]{1,0:T(1,128)}', space=vmem, size = 0x9000, scoped, tag = 'internal scratch']
  %s0 = inlined_call_operand.vmem [shape: f32[8,24], index: 0, kind: input, shape index: {}]
  %s1 = inlined_call_operand.vmem [shape: f32[24,32], index: 1, kind: input, shape index: {}]
  %s2 = inlined_call_operand.vmem [shape: f32[1,32], index: 2, kind: input, shape index: {}]
  %s3 = inlined_call_operand.vmem [shape: f32[32,16], index: 3, kind: input, shape index: {}]
  %s4 = inlined_call_operand.vmem [shape: f32[1,16], index: 4, kind: input, shape index: {}]
  %s5 = inlined_call_operand.hbm [shape: f32[8,16], index: 5, kind: output, shape index: {}]
  %s6 = sld [smem:[#allocation0]]
  $region30: #{tpu_custom_call.1} parent=0
    _
  %s8 = ssub.s32 1, %s6
  %s9 = scalar_select 0, %s8, %s6
  $region1: #{tpu_custom_call.1} parent=0
    #allocation2 [shape = 'u8[4096]{0}', space=vmem, size = 0x1000, scoped, tag = 'output window, operand 0, single buffered']
    #allocation3 [shape = 's32[1]{0}', space=sflag, size = 0x4, scoped, tag = 'scoped memory for tpu_custom_call.1']
    %10 = vsyncpa [#allocation3], 0
    // Predicated region
    $region2: #{tpu_custom_call.1} parent=1 // pred_check
      _
    $region3: #{tpu_custom_call.1} parent=1 // pred_check_branch
      %12 = sbr.rel (0) target = $region5
    $region4: #{tpu_custom_call.1} parent=1 // pred_region
      _
    $region5: #{tpu_custom_call.1} parent=1 // pred_fallthru
      _
    // Predicated region
    $region6: #{tpu_custom_call.1} parent=1 // pred_check
      _
    $region7: #{tpu_custom_call.1} parent=1 // pred_check_branch
      %14 = sbr.rel (0) target = $region9
    $region8: #{tpu_custom_call.1} parent=1 // pred_region
      _
    $region9: #{tpu_custom_call.1} parent=1 // pred_fallthru
      _
    // Predicated region
    $region10: #{tpu_custom_call.1} parent=1 // pred_check
      _
    $region11: #{tpu_custom_call.1} parent=1 // pred_check_branch
      %16 = sbr.rel (0) target = $region13
    $region12: #{tpu_custom_call.1} parent=1 // pred_region
      _
    $region13: #{tpu_custom_call.1} parent=1 // pred_fallthru
      _
    // Predicated region
    $region14: #{tpu_custom_call.1} parent=1 // pred_check
      _
    $region15: #{tpu_custom_call.1} parent=1 // pred_check_branch
      %18 = sbr.rel (0) target = $region17
    $region16: #{tpu_custom_call.1} parent=1 // pred_region
      _
    $region17: #{tpu_custom_call.1} parent=1 // pred_fallthru
      _
    // Predicated region
    $region18: #{tpu_custom_call.1} parent=1 // pred_check
      _
    $region19: #{tpu_custom_call.1} parent=1 // pred_check_branch
      %20 = sbr.rel (0) target = $region21
    $region20: #{tpu_custom_call.1} parent=1 // pred_region
      _
    $region21: #{tpu_custom_call.1} parent=1 // pred_fallthru
      _
    %v21 = vld [vmem:[%s0] sm:$0xff]
    %v22 = vld [vmem:[%s1] sm:$0xff]
    %v23 = vld [vmem:[%s1 + $0x8] sm:$0xff]
    %v24 = vld [vmem:[%s1 + $0x10] sm:$0xff]
    %v25 = vld [vmem:[%s2] sm:$0x1]
    %v27 = vperm.slane %v25, 0
    %vm29 = vcmask 195584
    %v31 = vsel %vm29, %v21, 0
    %33 = vmatpush.msra.mxu0 0.0
    %34 = vmatpush.msra.mxu0 0.0
    %35 = vmatpush.msra.mxu0 0.0
    %36 = vmatpush.msra.mxu0 0.0
    %37 = vmatpush.msra.mxu0 0.0
    %38 = vmatpush.msra.mxu0 0.0
    %39 = vmatpush.msra.mxu0 0.0
    %40 = vmatpush.msra.mxu0 0.0
    %41 = vmatpush.msra.mxu0 0.0
    %42 = vmatpush.msra.mxu0 0.0
    %43 = vmatpush.msra.mxu0 0.0
    %44 = vmatpush.msra.mxu0 0.0
    %45 = vmatpush.msra.mxu0 0.0
    %46 = vmatpush.msra.mxu0 %v24
    %47 = vmatpush.msra.mxu0 %v23
    %48 = vmatpush.msra.mxu0 %v22
    %49 = vmatmul.f32.gmra.mxu0 %v31
    %v50 = vpop.f32.mrf.mxu0
    %v51 = vadd.f32 %v27, %v50
    %52 = vdwg.mxu0
    %v53 = vmax.f32 %v51, 0.0
    %v54 = vld [vmem:[%s3] sm:$0xff]
    %v55 = vld [vmem:[%s3 + $0x8] sm:$0xff]
    %v56 = vld [vmem:[%s3 + $0x10] sm:$0xff]
    %v57 = vld [vmem:[%s3 + $0x18] sm:$0xff]
    %v58 = vld [vmem:[%s4] sm:$0x1]
    %v60 = vperm.slane %v58, 0
    %vm62 = vcmask 261120
    %v64 = vsel %vm62, %v53, 0
    %66 = vmatpush.msra.mxu0 0.0
    %67 = vmatpush.msra.mxu0 0.0
    %68 = vmatpush.msra.mxu0 0.0
    %69 = vmatpush.msra.mxu0 0.0
    %70 = vmatpush.msra.mxu0 0.0
    %71 = vmatpush.msra.mxu0 0.0
    %72 = vmatpush.msra.mxu0 0.0
    %73 = vmatpush.msra.mxu0 0.0
    %74 = vmatpush.msra.mxu0 0.0
    %75 = vmatpush.msra.mxu0 0.0
    %76 = vmatpush.msra.mxu0 0.0
    %77 = vmatpush.msra.mxu0 0.0
    %78 = vmatpush.msra.mxu0 %v57
    %79 = vmatpush.msra.mxu0 %v56
    %80 = vmatpush.msra.mxu0 %v55
    %81 = vmatpush.msra.mxu0 %v54
    %82 = vmatmul.f32.gmra.mxu0 %v64
    %v83 = vpop.f32.mrf.mxu0
    %v84 = vadd.f32 %v60, %v83
    %85 = vdwg.mxu0
    %vm86 = vcmask 130048
    %87 = vst.msk [vmem:[#allocation2] sm:$0xff] %vm86, %v84
    // Predicated region
    $region22: #{tpu_custom_call.1} parent=1 // pred_check
      _
    $region23: #{tpu_custom_call.1} parent=1 // pred_check_branch
      %89 = sbr.rel (0) target = $region25
    $region24: #{tpu_custom_call.1} parent=1 // pred_region
      %91 = vsyncadd [#allocation3], 0
      %s93 = sshll.u32 [#allocation2], 4
      %s94 = int_to_ptr.vmem [resolvable:$true] %s93
      %s95 = sshll.u32 %s5, 4
      %s96 = int_to_ptr.hbm [resolvable:$true] %s95
      %98 = dma.vmem_to_hbm [thread:$0]  %s94, 128, %s96, [#allocation3]
    $region25: #{tpu_custom_call.1} parent=1 // pred_fallthru
      _
    // Predicated region
    $region26: #{tpu_custom_call.1} parent=1 // pred_check
      _
    $region27: #{tpu_custom_call.1} parent=1 // pred_check_branch
      %100 = sbr.rel (0) target = $region29
    $region28: #{tpu_custom_call.1} parent=1 // pred_region
      %102 = dma.done [#allocation3], 128
    $region29: #{tpu_custom_call.1} parent=1 // pred_fallthru
      _
    %103 = vsyncpa [#allocation3], 1

</llo_original>
